<compile_context>
chip_gen: v6e
topology: v6e:2x2x1
jax: 0.10.0
libtpu: 0.0.40
codegen_flags: <defaults>
</compile_context>

<pallas_src>
import functools
import math

import jax
import jax.numpy as jnp
from jax.experimental import pallas as pl
from jax.experimental.pallas import tpu as pltpu


def _round_up(n, m):
    return -(-n // m) * m


def _pad2d(x, rows, cols):
    r, c = x.shape
    if r == rows and c == cols:
        return x
    return jnp.pad(x, ((0, rows - r), (0, cols - c)))


def _lora_linear_kernel(x_ref, w_ref, b_ref, a_ref, bl_ref, o_ref, *, alpha):
    # Fused base linear + low-rank LoRA path; all matmuls on the MXU with f32
    # accumulation, bias add / scale on the VPU.
    x = x_ref[...]
    base = jnp.dot(x, w_ref[...], preferred_element_type=jnp.float32)
    xa = jnp.dot(x, a_ref[...], preferred_element_type=jnp.float32)
    lora = jnp.dot(xa.astype(bl_ref.dtype), bl_ref[...],
                   preferred_element_type=jnp.float32)
    y = base + alpha * lora + b_ref[...].astype(jnp.float32)
    o_ref[...] = y.astype(o_ref.dtype)


def lora_linear_forward(x, w, b, lora_a, lora_b, *, alpha, tile_m=128,
                        compute_dtype=None):
    """y = x @ w + b + alpha * (x @ lora_a @ lora_b)

    x:       [batch, in_features]
    w:       [in_features, out_features]   (transposed vs. torch Linear.weight)
    b:       [1, out_features]
    lora_a:  [in_features, rank]
    lora_b:  [rank, out_features]
    """
    out_dtype = x.dtype
    if compute_dtype is not None:  # e.g. jnp.bfloat16 on v6e / v7x
        x, w, b, lora_a, lora_b = (t.astype(compute_dtype)
                                   for t in (x, w, b, lora_a, lora_b))

    batch, in_f = x.shape
    out_f = w.shape[1]
    rank = lora_a.shape[1]

    # Lane/sublane-dense zero padding (zero rows/cols contribute nothing).
    bp = _round_up(batch, tile_m)
    fp = _round_up(in_f, 128)
    op = _round_up(out_f, 128)
    rp = _round_up(rank, 128)

    x_p = _pad2d(x, bp, fp)
    w_p = _pad2d(w, fp, op)
    b_p = _pad2d(b, 1, op)
    a_p = _pad2d(lora_a, fp, rp)
    bl_p = _pad2d(lora_b, rp, op)

    grid = (bp // tile_m,)
    invariant = lambda i: (0, 0)

    out_p = pl.pallas_call(
        functools.partial(_lora_linear_kernel, alpha=float(alpha)),
        out_shape=jax.ShapeDtypeStruct((bp, op), out_dtype),
        grid_spec=pltpu.PrefetchScalarGridSpec(
            num_scalar_prefetch=0,
            grid=grid,
            in_specs=[
                pl.BlockSpec((tile_m, fp), lambda i: (i, 0)),  # x tile over batch
                pl.BlockSpec((fp, op), invariant),             # frozen W (resident)
                pl.BlockSpec((1, op), invariant),              # bias
                pl.BlockSpec((fp, rp), invariant),             # LoRA A
                pl.BlockSpec((rp, op), invariant),             # LoRA B
            ],
            out_specs=pl.BlockSpec((tile_m, op), lambda i: (i, 0)),
        ),
        compiler_params=pltpu.CompilerParams(
            dimension_semantics=("parallel",),  # batch tiles shard across TCs
        ),
    )(x_p, w_p, b_p, a_p, bl_p)

    # Slice the lane-dense padded output back to the logical shape.
    return out_p[:batch, :out_f]


if __name__ == "__main__":
    batch, in_features, out_features, rank, alpha = 4, 32, 16, 8, 2.0

    key = jax.random.PRNGKey(0)
    kx, kw, kb, ka, kbl = jax.random.split(key, 5)

    x = jax.random.normal(kx, (batch, in_features), jnp.float32)

    bound = 1.0 / math.sqrt(in_features)  # torch.nn.Linear default init
    w = jax.random.uniform(kw, (in_features, out_features), jnp.float32, -bound, bound)
    b = jax.random.uniform(kb, (1, out_features), jnp.float32, -bound, bound)

    std = 1.0 / math.sqrt(rank)
    lora_a = jax.random.normal(ka, (in_features, rank), jnp.float32) * std
    # PyTorch inits LoRA B to zeros (adapter starts as a no-op); use non-zero
    # values here so the low-rank path is actually exercised by the check.
    lora_b = jax.random.normal(kbl, (rank, out_features), jnp.float32) * 0.1

    out = lora_linear_forward(x, w, b, lora_a, lora_b, alpha=alpha)
    out = jax.block_until_ready(out)

    ref = x @ w + b + alpha * ((x @ lora_a) @ lora_b)
    assert out.shape == (batch, out_features)
    assert jnp.allclose(out, ref, atol=1e-5, rtol=1e-5), "mismatch vs JAX reference"

    print("KERNEL_OK")
</pallas_src>

<mosaic_0001>
module attributes {stable_mosaic.version = 11 : i64} {
  func.func @_lora_linear_kernel(%arg0: i32, %arg1: memref<128x128xf32, #tpu.memory_space<vmem>>, %arg2: memref<128x128xf32, #tpu.memory_space<vmem>>, %arg3: memref<1x128xf32, #tpu.memory_space<vmem>>, %arg4: memref<128x128xf32, #tpu.memory_space<vmem>>, %arg5: memref<128x128xf32, #tpu.memory_space<vmem>>, %arg6: memref<128x128xf32, #tpu.memory_space<vmem>>) attributes {dimension_semantics = [#tpu.dimension_semantics<parallel>], iteration_bounds = array<i64: 1>, scalar_prefetch = 0 : i64, scratch_operands = 0 : i64, tpu.core_type = #tpu.core_type<tc>, window_params = [{transform_indices = @transform_0, window_bounds = array<i64: 128, 128>}, {pipeline_mode = #tpu.pipeline_mode<synchronous>, transform_indices = @transform_1, window_bounds = array<i64: 128, 128>}, {pipeline_mode = #tpu.pipeline_mode<synchronous>, transform_indices = @transform_2, window_bounds = array<i64: 1, 128>}, {pipeline_mode = #tpu.pipeline_mode<synchronous>, transform_indices = @transform_3, window_bounds = array<i64: 128, 128>}, {pipeline_mode = #tpu.pipeline_mode<synchronous>, transform_indices = @transform_4, window_bounds = array<i64: 128, 128>}, {transform_indices = @transform_5, window_bounds = array<i64: 128, 128>}]} {
    %c0 = arith.constant 0 : index
    %c0_0 = arith.constant 0 : index
    %0 = vector.load %arg1[%c0, %c0_0] : memref<128x128xf32, #tpu.memory_space<vmem>>, vector<128x128xf32>
    %c0_1 = arith.constant 0 : index
    %c0_2 = arith.constant 0 : index
    %1 = vector.load %arg2[%c0_1, %c0_2] : memref<128x128xf32, #tpu.memory_space<vmem>>, vector<128x128xf32>
    %cst = arith.constant dense<0.000000e+00> : vector<128x128xf32>
    %2 = tpu.matmul %0, %1, %cst {dimension_numbers = #tpu.dot_dimension_numbers<[1], [0], [0], [1], [0, 0, 1, 1], [], []>} : vector<128x128xf32>, vector<128x128xf32>, vector<128x128xf32> -> vector<128x128xf32>
    %c0_3 = arith.constant 0 : index
    %c0_4 = arith.constant 0 : index
    %3 = vector.load %arg4[%c0_3, %c0_4] : memref<128x128xf32, #tpu.memory_space<vmem>>, vector<128x128xf32>
    %cst_5 = arith.constant dense<0.000000e+00> : vector<128x128xf32>
    %4 = tpu.matmul %0, %3, %cst_5 {dimension_numbers = #tpu.dot_dimension_numbers<[1], [0], [0], [1], [0, 0, 1, 1], [], []>} : vector<128x128xf32>, vector<128x128xf32>, vector<128x128xf32> -> vector<128x128xf32>
    %c0_6 = arith.constant 0 : index
    %c0_7 = arith.constant 0 : index
    %5 = vector.load %arg5[%c0_6, %c0_7] : memref<128x128xf32, #tpu.memory_space<vmem>>, vector<128x128xf32>
    %cst_8 = arith.constant dense<0.000000e+00> : vector<128x128xf32>
    %6 = tpu.matmul %4, %5, %cst_8 {dimension_numbers = #tpu.dot_dimension_numbers<[1], [0], [0], [1], [0, 0, 1, 1], [], []>} : vector<128x128xf32>, vector<128x128xf32>, vector<128x128xf32> -> vector<128x128xf32>
    %cst_9 = arith.constant 2.000000e+00 : f32
    %7 = vector.broadcast %cst_9 : f32 to vector<128x128xf32>
    %8 = arith.mulf %7, %6 : vector<128x128xf32>
    %9 = arith.addf %2, %8 : vector<128x128xf32>
    %c0_10 = arith.constant 0 : index
    %c0_11 = arith.constant 0 : index
    %10 = vector.load %arg3[%c0_10, %c0_11] : memref<1x128xf32, #tpu.memory_space<vmem>>, vector<1x128xf32>
    %11 = vector.broadcast %10 : vector<1x128xf32> to vector<128x128xf32>
    %12 = arith.addf %9, %11 : vector<128x128xf32>
    %c0_12 = arith.constant 0 : index
    %c0_13 = arith.constant 0 : index
    %13 = vector.load %arg6[%c0_12, %c0_13] : memref<128x128xf32, #tpu.memory_space<vmem>>, vector<128x128xf32>
    tpu.vector_store %arg6[%c0_12, %c0_13], %12 {strides = array<i32>} : memref<128x128xf32, #tpu.memory_space<vmem>>, vector<128x128xf32>,
    return
  }
  func.func @transform_0(%arg0: i32) -> (i32, i32) {
    %c0_i32 = arith.constant 0 : i32
    %c0_i32_0 = arith.constant 0 : i32
    return %arg0, %c0_i32 : i32, i32
  }
  func.func @transform_1(%arg0: i32) -> (i32, i32) {
    %c0_i32 = arith.constant 0 : i32
    %c0_i32_0 = arith.constant 0 : i32
    %c0_i32_1 = arith.constant 0 : i32
    return %c0_i32, %c0_i32_0 : i32, i32
  }
  func.func @transform_2(%arg0: i32) -> (i32, i32) {
    %c0_i32 = arith.constant 0 : i32
    %c0_i32_0 = arith.constant 0 : i32
    %c0_i32_1 = arith.constant 0 : i32
    return %c0_i32, %c0_i32_0 : i32, i32
  }
  func.func @transform_3(%arg0: i32) -> (i32, i32) {
    %c0_i32 = arith.constant 0 : i32
    %c0_i32_0 = arith.constant 0 : i32
    %c0_i32_1 = arith.constant 0 : i32
    return %c0_i32, %c0_i32_0 : i32, i32
  }
  func.func @transform_4(%arg0: i32) -> (i32, i32) {
    %c0_i32 = arith.constant 0 : i32
    %c0_i32_0 = arith.constant 0 : i32
    %c0_i32_1 = arith.constant 0 : i32
    return %c0_i32, %c0_i32_0 : i32, i32
  }
  func.func @transform_5(%arg0: i32) -> (i32, i32) {
    %c0_i32 = arith.constant 0 : i32
    %c0_i32_0 = arith.constant 0 : i32
    return %arg0, %c0_i32 : i32, i32
  }
}

</mosaic_0001>

<llo_original>
// kernel: tpu_custom_call.1
$region0: #{tpu_custom_call.1}
  #allocation0 [shape = 'u32[]', space=smem, size = 0x4, offset = 0x4, fixed_abs, tag = 'smem constant byte address 0x4 - core index']
  #allocation1 [shape = 'u32[144,128]{1,0:T(1,128)}', space=vmem, size = 0x12000, scoped, tag = 'internal scratch']
  %s0 = inlined_call_operand.hbm [shape: f32[128,128], index: 0, kind: input, shape index: {}]
  %s1 = inlined_call_operand.hbm [shape: f32[128,128], index: 1, kind: input, shape index: {}]
  %s2 = inlined_call_operand.vmem [shape: f32[1,128], index: 2, kind: input, shape index: {}]
  %s3 = inlined_call_operand.hbm [shape: f32[128,128], index: 3, kind: input, shape index: {}]
  %s4 = inlined_call_operand.hbm [shape: f32[128,128], index: 4, kind: input, shape index: {}]
  %s5 = inlined_call_operand.hbm [shape: f32[128,128], index: 5, kind: output, shape index: {}]
  %s6 = sld [smem:[#allocation0]]
  $region46: #{tpu_custom_call.1} parent=0
    _
  %s8 = ssub.s32 1, %s6
  %s9 = scalar_select 0, %s8, %s6
  $region1: #{tpu_custom_call.1} parent=0
    #allocation2 [shape = 'u8[65536]{0}', space=vmem, size = 0x10000, scoped, tag = 'input window, operand 0, single buffered']
    #allocation3 [shape = 's32[1]{0}', space=sflag, size = 0x4, scoped, tag = 'scoped memory for tpu_custom_call.1']
    #allocation4 [shape = 's32[1]{0}', space=sflag, size = 0x4, scoped, tag = 'scoped memory for tpu_custom_call.1']
    #allocation5 [shape = 'u8[65536]{0}', space=vmem, size = 0x10000, scoped, tag = 'input window, operand 1, single buffered']
    #allocation6 [shape = 's32[1]{0}', space=sflag, size = 0x4, scoped, tag = 'scoped memory for tpu_custom_call.1']
    #allocation7 [shape = 'u8[65536]{0}', space=vmem, size = 0x10000, scoped, tag = 'input window, operand 3, single buffered']
    #allocation8 [shape = 'u8[65536]{0}', space=vmem, size = 0x10000, scoped, tag = 'input window, operand 4, single buffered']
    #allocation9 [shape = 's32[1]{0}', space=sflag, size = 0x4, scoped, tag = 'scoped memory for tpu_custom_call.1']
    #allocation10 [shape = 'u8[65536]{0}', space=vmem, size = 0x10000, scoped, tag = 'output window, operand 0, single buffered']
    %10 = vsyncpa [#allocation3], 0
    %11 = vsyncpa [#allocation6], 0
    %12 = vsyncpa [#allocation9], 0
    %13 = vsyncpa [#allocation4], 0
    // Predicated region
    $region2: #{tpu_custom_call.1} parent=1 // pred_check
      _
    $region3: #{tpu_custom_call.1} parent=1 // pred_check_branch
      %15 = sbr.rel (0) target = $region5
    $region4: #{tpu_custom_call.1} parent=1 // pred_region
      %s17 = ssub.s32 2048, 2048
      %18 = vsyncadd [#allocation3], %s17
      %s19 = sshll.u32 [#allocation2], 4
      %s20 = int_to_ptr.vmem [resolvable:$true] %s19
      %25 = dma.hbm_to_vmem [thread:$0]  %s0, 2048, %s20, [#allocation3], 128, 128, 8
    $region5: #{tpu_custom_call.1} parent=1 // pred_fallthru
      _
    // Predicated region
    $region6: #{tpu_custom_call.1} parent=1 // pred_check
      _
    $region7: #{tpu_custom_call.1} parent=1 // pred_check_branch
      %27 = sbr.rel (0) target = $region9
    $region8: #{tpu_custom_call.1} parent=1 // pred_region
      %s29 = ssub.s32 2048, 2048
      %30 = vsyncadd [#allocation6], %s29
      %s31 = sshll.u32 [#allocation5], 4
      %s32 = int_to_ptr.vmem [resolvable:$true] %s31
      %37 = dma.hbm_to_vmem [thread:$0]  %s1, 2048, %s32, [#allocation6], 128, 128, 8
    $region9: #{tpu_custom_call.1} parent=1 // pred_fallthru
      _
    // Predicated region
    $region10: #{tpu_custom_call.1} parent=1 // pred_check
      _
    $region11: #{tpu_custom_call.1} parent=1 // pred_check_branch
      %39 = sbr.rel (0) target = $region13
    $region12: #{tpu_custom_call.1} parent=1 // pred_region
      _
    $region13: #{tpu_custom_call.1} parent=1 // pred_fallthru
      _
    // Predicated region
    $region14: #{tpu_custom_call.1} parent=1 // pred_check
      _
    $region15: #{tpu_custom_call.1} parent=1 // pred_check_branch
      %41 = sbr.rel (0) target = $region17
    $region16: #{tpu_custom_call.1} parent=1 // pred_region
      %s43 = ssub.s32 2048, 2048
      %44 = vsyncadd [#allocation6], %s43
      %s45 = sshll.u32 [#allocation7], 4
      %s46 = int_to_ptr.vmem [resolvable:$true] %s45
      %51 = dma.hbm_to_vmem [thread:$0]  %s3, 2048, %s46, [#allocation6], 128, 128, 8
    $region17: #{tpu_custom_call.1} parent=1 // pred_fallthru
      _
    // Predicated region
    $region18: #{tpu_custom_call.1} parent=1 // pred_check
      _
    $region19: #{tpu_custom_call.1} parent=1 // pred_check_branch
      %53 = sbr.rel (0) target = $region21
    $region20: #{tpu_custom_call.1} parent=1 // pred_region
      %s55 = ssub.s32 2048, 2048
      %56 = vsyncadd [#allocation9], %s55
      %s57 = sshll.u32 [#allocation8], 4
      %s58 = int_to_ptr.vmem [resolvable:$true] %s57
      %63 = dma.hbm_to_vmem [thread:$0]  %s4, 2048, %s58, [#allocation9], 128, 128, 8
    $region21: #{tpu_custom_call.1} parent=1 // pred_fallthru
      _
    // Predicated region
    $region22: #{tpu_custom_call.1} parent=1 // pred_check
      _
    $region23: #{tpu_custom_call.1} parent=1 // pred_check_branch
      %65 = sbr.rel (0) target = $region25
    $region24: #{tpu_custom_call.1} parent=1 // pred_region
      %66 = dma.done [#allocation3], 2048
    $region25: #{tpu_custom_call.1} parent=1 // pred_fallthru
      _
    // Predicated region
    $region26: #{tpu_custom_call.1} parent=1 // pred_check
      _
    $region27: #{tpu_custom_call.1} parent=1 // pred_check_branch
      %68 = sbr.rel (0) target = $region29
    $region28: #{tpu_custom_call.1} parent=1 // pred_region
      %69 = dma.done [#allocation6], 2048
    $region29: #{tpu_custom_call.1} parent=1 // pred_fallthru
      _
    // Predicated region
    $region30: #{tpu_custom_call.1} parent=1 // pred_check
      _
    $region31: #{tpu_custom_call.1} parent=1 // pred_check_branch
      %71 = sbr.rel (0) target = $region33
    $region32: #{tpu_custom_call.1} parent=1 // pred_region
      %72 = dma.done [#allocation6], 2048
    $region33: #{tpu_custom_call.1} parent=1 // pred_fallthru
      _
    // Predicated region
    $region34: #{tpu_custom_call.1} parent=1 // pred_check
      _
    $region35: #{tpu_custom_call.1} parent=1 // pred_check_branch
      %74 = sbr.rel (0) target = $region37
    $region36: #{tpu_custom_call.1} parent=1 // pred_region
      %75 = dma.done [#allocation9], 2048
    $region37: #{tpu_custom_call.1} parent=1 // pred_fallthru
      _
    %v76 = vld [vmem:[#allocation2] sm:$0xff]
    %v77 = vld [vmem:[#allocation2 + $0x8] sm:$0xff]
    %v78 = vld [vmem:[#allocation2 + $0x10] sm:$0xff]
    %v79 = vld [vmem:[#allocation2 + $0x18] sm:$0xff]
    %v80 = vld [vmem:[#allocation2 + $0x20] sm:$0xff]
    %v81 = vld [vmem:[#allocation2 + $0x28] sm:$0xff]
    %v82 = vld [vmem:[#allocation2 + $0x30] sm:$0xff]
    %v83 = vld [vmem:[#allocation2 + $0x38] sm:$0xff]
    %v84 = vld [vmem:[#allocation2 + $0x40] sm:$0xff]
    %v85 = vld [vmem:[#allocation2 + $0x48] sm:$0xff]
    %v86 = vld [vmem:[#allocation2 + $0x50] sm:$0xff]
    %v87 = vld [vmem:[#allocation2 + $0x58] sm:$0xff]
    %v88 = vld [vmem:[#allocation2 + $0x60] sm:$0xff]
    %v89 = vld [vmem:[#allocation2 + $0x68] sm:$0xff]
    %v90 = vld [vmem:[#allocation2 + $0x70] sm:$0xff]
    %v91 = vld [vmem:[#allocation2 + $0x78] sm:$0xff]
    %v92 = vld [vmem:[#allocation5] sm:$0xff]
    %v93 = vld [vmem:[#allocation5 + $0x8] sm:$0xff]
    %v94 = vld [vmem:[#allocation5 + $0x10] sm:$0xff]
    %v95 = vld [vmem:[#allocation5 + $0x18] sm:$0xff]
    %v96 = vld [vmem:[#allocation5 + $0x20] sm:$0xff]
    %v97 = vld [vmem:[#allocation5 + $0x28] sm:$0xff]
    %v98 = vld [vmem:[#allocation5 + $0x30] sm:$0xff]
    %v99 = vld [vmem:[#allocation5 + $0x38] sm:$0xff]
    %v100 = vld [vmem:[#allocation5 + $0x40] sm:$0xff]
    %v101 = vld [vmem:[#allocation5 + $0x48] sm:$0xff]
    %v102 = vld [vmem:[#allocation5 + $0x50] sm:$0xff]
    %v103 = vld [vmem:[#allocation5 + $0x58] sm:$0xff]
    %v104 = vld [vmem:[#allocation5 + $0x60] sm:$0xff]
    %v105 = vld [vmem:[#allocation5 + $0x68] sm:$0xff]
    %v106 = vld [vmem:[#allocation5 + $0x70] sm:$0xff]
    %v107 = vld [vmem:[#allocation5 + $0x78] sm:$0xff]
    %v108 = vld [vmem:[#allocation7] sm:$0xff]
    %v109 = vld [vmem:[#allocation7 + $0x8] sm:$0xff]
    %v110 = vld [vmem:[#allocation7 + $0x10] sm:$0xff]
    %v111 = vld [vmem:[#allocation7 + $0x18] sm:$0xff]
    %v112 = vld [vmem:[#allocation7 + $0x20] sm:$0xff]
    %v113 = vld [vmem:[#allocation7 + $0x28] sm:$0xff]
    %v114 = vld [vmem:[#allocation7 + $0x30] sm:$0xff]
    %v115 = vld [vmem:[#allocation7 + $0x38] sm:$0xff]
    %v116 = vld [vmem:[#allocation7 + $0x40] sm:$0xff]
    %v117 = vld [vmem:[#allocation7 + $0x48] sm:$0xff]
    %v118 = vld [vmem:[#allocation7 + $0x50] sm:$0xff]
    %v119 = vld [vmem:[#allocation7 + $0x58] sm:$0xff]
    %v120 = vld [vmem:[#allocation7 + $0x60] sm:$0xff]
    %v121 = vld [vmem:[#allocation7 + $0x68] sm:$0xff]
    %v122 = vld [vmem:[#allocation7 + $0x70] sm:$0xff]
    %v123 = vld [vmem:[#allocation7 + $0x78] sm:$0xff]
    %124 = vmatprep.subr.mxu0 0.0
    %125 = vmatpush1.msra.mxu0 %v123
    %126 = vmatprep.subr.mxu0 0.0
    %127 = vmatpush1.msra.mxu0 %v122
    %128 = vmatprep.subr.mxu0 0.0
    %129 = vmatpush1.msra.mxu0 %v121
    %130 = vmatprep.subr.mxu0 0.0
    %131 = vmatpush1.msra.mxu0 %v120
    %132 = vmatprep.subr.mxu0 0.0
    %133 = vmatpush1.msra.mxu0 %v119
    %134 = vmatprep.subr.mxu0 0.0
    %135 = vmatpush1.msra.mxu0 %v118
    %136 = vmatprep.subr.mxu0 0.0
    %137 = vmatpush1.msra.mxu0 %v117
    %138 = vmatprep.subr.mxu0 0.0
    %139 = vmatpush1.msra.mxu0 %v116
    %140 = vmatprep.subr.mxu0 0.0
    %141 = vmatpush1.msra.mxu0 %v115
    %142 = vmatprep.subr.mxu0 0.0
    %143 = vmatpush1.msra.mxu0 %v114
    %144 = vmatprep.subr.mxu0 0.0
    %145 = vmatpush1.msra.mxu0 %v113
    %146 = vmatprep.subr.mxu0 0.0
    %147 = vmatpush1.msra.mxu0 %v112
    %148 = vmatprep.subr.mxu0 0.0
    %149 = vmatpush1.msra.mxu0 %v111
    %150 = vmatprep.subr.mxu0 0.0
    %151 = vmatpush1.msra.mxu0 %v110
    %152 = vmatprep.subr.mxu0 0.0
    %153 = vmatpush1.msra.mxu0 %v109
    %154 = vmatprep.subr.mxu0 0.0
    %155 = vmatpush1.msra.mxu0 %v108
    %156 = vmatprep.subr.mxu0 0.0
    %157 = vmatpush2.msra.mxu0 0.0
    %158 = vmatprep.subr.mxu0 0.0
    %159 = vmatpush2.msra.mxu0 0.0
    %160 = vmatprep.subr.mxu0 0.0
    %161 = vmatpush2.msra.mxu0 0.0
    %162 = vmatprep.subr.mxu0 0.0
    %163 = vmatpush2.msra.mxu0 0.0
    %164 = vmatprep.subr.mxu0 0.0
    %165 = vmatpush2.msra.mxu0 0.0
    %166 = vmatprep.subr.mxu0 0.0
    %167 = vmatpush2.msra.mxu0 0.0
    %168 = vmatprep.subr.mxu0 0.0
    %169 = vmatpush2.msra.mxu0 0.0
    %170 = vmatprep.subr.mxu0 0.0
    %171 = vmatpush2.msra.mxu0 0.0
    %172 = vmatprep.subr.mxu0 0.0
    %173 = vmatpush2.msra.mxu0 0.0
    %174 = vmatprep.subr.mxu0 0.0
    %175 = vmatpush2.msra.mxu0 0.0
    %176 = vmatprep.subr.mxu0 0.0
    %177 = vmatpush2.msra.mxu0 0.0
    %178 = vmatprep.subr.mxu0 0.0
    %179 = vmatpush2.msra.mxu0 0.0
    %180 = vmatprep.subr.mxu0 0.0
    %181 = vmatpush2.msra.mxu0 0.0
    %182 = vmatprep.subr.mxu0 0.0
    %183 = vmatpush2.msra.mxu0 0.0
    %184 = vmatprep.subr.mxu0 0.0
    %185 = vmatpush2.msra.mxu0 0.0
    %186 = vmatprep.subr.mxu0 0.0
    %187 = vmatpush2.msra.mxu0 0.0
    %188 = vmatprep.mubr.f32.mxu0 0.0
    %189 = vmatmul.mubr.f32.gmra.mxu0 %v76
    %v190 = vpop.f32.mrf.mxu0
    %v191 = vadd.f32 0.0, %v190
    %v192 = vpop.f32.mrf.mxu0
    %193 = vmatprep.mubr.f32.mxu0 0.0
    %194 = vmatmul.mubr.f32.gmra.mxu0 %v77
    %v195 = vpop.f32.mrf.mxu0
    %v196 = vadd.f32 0.0, %v195
    %v197 = vpop.f32.mrf.mxu0
    %198 = vmatprep.mubr.f32.mxu0 0.0
    %199 = vmatmul.mubr.f32.gmra.mxu0 %v78
    %v200 = vpop.f32.mrf.mxu0
    %v201 = vadd.f32 0.0, %v200
    %v202 = vpop.f32.mrf.mxu0
    %203 = vmatprep.mubr.f32.mxu0 0.0
    %204 = vmatmul.mubr.f32.gmra.mxu0 %v79
    %v205 = vpop.f32.mrf.mxu0
    %v206 = vadd.f32 0.0, %v205
    %v207 = vpop.f32.mrf.mxu0
    %208 = vmatprep.mubr.f32.mxu0 0.0
    %209 = vmatmul.mubr.f32.gmra.mxu0 %v80
    %v210 = vpop.f32.mrf.mxu0
    %v211 = vadd.f32 0.0, %v210
    %v212 = vpop.f32.mrf.mxu0
    %213 = vmatprep.mubr.f32.mxu0 0.0
    %214 = vmatmul.mubr.f32.gmra.mxu0 %v81
    %v215 = vpop.f32.mrf.mxu0
    %v216 = vadd.f32 0.0, %v215
    %v217 = vpop.f32.mrf.mxu0
    %218 = vmatprep.mubr.f32.mxu0 0.0
    %219 = vmatmul.mubr.f32.gmra.mxu0 %v82
    %v220 = vpop.f32.mrf.mxu0
    %v221 = vadd.f32 0.0, %v220
    %v222 = vpop.f32.mrf.mxu0
    %223 = vmatprep.mubr.f32.mxu0 0.0
    %224 = vmatmul.mubr.f32.gmra.mxu0 %v83
    %v225 = vpop.f32.mrf.mxu0
    %v226 = vadd.f32 0.0, %v225
    %v227 = vpop.f32.mrf.mxu0
    %228 = vmatprep.mubr.f32.mxu0 0.0
    %229 = vmatmul.mubr.f32.gmra.mxu0 %v84
    %v230 = vpop.f32.mrf.mxu0
    %v231 = vadd.f32 0.0, %v230
    %v232 = vpop.f32.mrf.mxu0
    %233 = vmatprep.mubr.f32.mxu0 0.0
    %234 = vmatmul.mubr.f32.gmra.mxu0 %v85
    %v235 = vpop.f32.mrf.mxu0
    %v236 = vadd.f32 0.0, %v235
    %v237 = vpop.f32.mrf.mxu0
    %238 = vmatprep.mubr.f32.mxu0 0.0
    %239 = vmatmul.mubr.f32.gmra.mxu0 %v86
    %v240 = vpop.f32.mrf.mxu0
    %v241 = vadd.f32 0.0, %v240
    %v242 = vpop.f32.mrf.mxu0
    %243 = vmatprep.mubr.f32.mxu0 0.0
    %244 = vmatmul.mubr.f32.gmra.mxu0 %v87
    %v245 = vpop.f32.mrf.mxu0
    %v246 = vadd.f32 0.0, %v245
    %v247 = vpop.f32.mrf.mxu0
    %248 = vmatprep.mubr.f32.mxu0 0.0
    %249 = vmatmul.mubr.f32.gmra.mxu0 %v88
    %v250 = vpop.f32.mrf.mxu0
    %v251 = vadd.f32 0.0, %v250
    %v252 = vpop.f32.mrf.mxu0
    %253 = vmatprep.mubr.f32.mxu0 0.0
    %254 = vmatmul.mubr.f32.gmra.mxu0 %v89
    %v255 = vpop.f32.mrf.mxu0
    %v256 = vadd.f32 0.0, %v255
    %v257 = vpop.f32.mrf.mxu0
    %258 = vmatprep.mubr.f32.mxu0 0.0
    %259 = vmatmul.mubr.f32.gmra.mxu0 %v90
    %v260 = vpop.f32.mrf.mxu0
    %v261 = vadd.f32 0.0, %v260
    %v262 = vpop.f32.mrf.mxu0
    %263 = vmatprep.mubr.f32.mxu0 0.0
    %264 = vmatmul.mubr.f32.gmra.mxu0 %v91
    %v265 = vpop.f32.mrf.mxu0
    %v266 = vadd.f32 0.0, %v265
    %v267 = vpop.f32.mrf.mxu0
    %268 = vdwg.mxu0
    %v269 = vld [vmem:[#allocation8] sm:$0xff]
    %v270 = vld [vmem:[#allocation8 + $0x8] sm:$0xff]
    %v271 = vld [vmem:[#allocation8 + $0x10] sm:$0xff]
    %v272 = vld [vmem:[#allocation8 + $0x18] sm:$0xff]
    %v273 = vld [vmem:[#allocation8 + $0x20] sm:$0xff]
    %v274 = vld [vmem:[#allocation8 + $0x28] sm:$0xff]
    %v275 = vld [vmem:[#allocation8 + $0x30] sm:$0xff]
    %v276 = vld [vmem:[#allocation8 + $0x38] sm:$0xff]
    %v277 = vld [vmem:[#allocation8 + $0x40] sm:$0xff]
    %v278 = vld [vmem:[#allocation8 + $0x48] sm:$0xff]
    %v279 = vld [vmem:[#allocation8 + $0x50] sm:$0xff]
    %v280 = vld [vmem:[#allocation8 + $0x58] sm:$0xff]
    %v281 = vld [vmem:[#allocation8 + $0x60] sm:$0xff]
    %v282 = vld [vmem:[#allocation8 + $0x68] sm:$0xff]
    %v283 = vld [vmem:[#allocation8 + $0x70] sm:$0xff]
    %v284 = vld [vmem:[#allocation8 + $0x78] sm:$0xff]
    %285 = vmatprep.subr.mxu0 0.0
    %286 = vmatpush1.msra.mxu0 %v284
    %287 = vmatprep.subr.mxu0 0.0
    %288 = vmatpush1.msra.mxu0 %v283
    %289 = vmatprep.subr.mxu0 0.0
    %290 = vmatpush1.msra.mxu0 %v282
    %291 = vmatprep.subr.mxu0 0.0
    %292 = vmatpush1.msra.mxu0 %v281
    %293 = vmatprep.subr.mxu0 0.0
    %294 = vmatpush1.msra.mxu0 %v280
    %295 = vmatprep.subr.mxu0 0.0
    %296 = vmatpush1.msra.mxu0 %v279
    %297 = vmatprep.subr.mxu0 0.0
    %298 = vmatpush1.msra.mxu0 %v278
    %299 = vmatprep.subr.mxu0 0.0
    %300 = vmatpush1.msra.mxu0 %v277
    %301 = vmatprep.subr.mxu0 0.0
    %302 = vmatpush1.msra.mxu0 %v276
    %303 = vmatprep.subr.mxu0 0.0
    %304 = vmatpush1.msra.mxu0 %v275
    %305 = vmatprep.subr.mxu0 0.0
    %306 = vmatpush1.msra.mxu0 %v274
    %307 = vmatprep.subr.mxu0 0.0
    %308 = vmatpush1.msra.mxu0 %v273
    %309 = vmatprep.subr.mxu0 0.0
    %310 = vmatpush1.msra.mxu0 %v272
    %311 = vmatprep.subr.mxu0 0.0
    %312 = vmatpush1.msra.mxu0 %v271
    %313 = vmatprep.subr.mxu0 0.0
    %314 = vmatpush1.msra.mxu0 %v270
    %315 = vmatprep.subr.mxu0 0.0
    %316 = vmatpush1.msra.mxu0 %v269
    %317 = vmatprep.subr.mxu0 0.0
    %318 = vmatpush2.msra.mxu0 0.0
    %319 = vmatprep.subr.mxu0 0.0
    %320 = vmatpush2.msra.mxu0 0.0
    %321 = vmatprep.subr.mxu0 0.0
    %322 = vmatpush2.msra.mxu0 0.0
    %323 = vmatprep.subr.mxu0 0.0
    %324 = vmatpush2.msra.mxu0 0.0
    %325 = vmatprep.subr.mxu0 0.0
    %326 = vmatpush2.msra.mxu0 0.0
    %327 = vmatprep.subr.mxu0 0.0
    %328 = vmatpush2.msra.mxu0 0.0
    %329 = vmatprep.subr.mxu0 0.0
    %330 = vmatpush2.msra.mxu0 0.0
    %331 = vmatprep.subr.mxu0 0.0
    %332 = vmatpush2.msra.mxu0 0.0
    %333 = vmatprep.subr.mxu0 0.0
    %334 = vmatpush2.msra.mxu0 0.0
    %335 = vmatprep.subr.mxu0 0.0
    %336 = vmatpush2.msra.mxu0 0.0
    %337 = vmatprep.subr.mxu0 0.0
    %338 = vmatpush2.msra.mxu0 0.0
    %339 = vmatprep.subr.mxu0 0.0
    %340 = vmatpush2.msra.mxu0 0.0
    %341 = vmatprep.subr.mxu0 0.0
    %342 = vmatpush2.msra.mxu0 0.0
    %343 = vmatprep.subr.mxu0 0.0
    %344 = vmatpush2.msra.mxu0 0.0
    %345 = vmatprep.subr.mxu0 0.0
    %346 = vmatpush2.msra.mxu0 0.0
    %347 = vmatprep.subr.mxu0 0.0
    %348 = vmatpush2.msra.mxu0 0.0
    %349 = vmatprep.mubr.f32.mxu0 0.0
    %350 = vmatmul.mubr.f32.gmra.mxu0 %v191
    %v351 = vpop.f32.mrf.mxu0
    %v352 = vadd.f32 0.0, %v351
    %v353 = vpop.f32.mrf.mxu0
    %354 = vmatprep.mubr.f32.mxu0 0.0
    %355 = vmatmul.mubr.f32.gmra.mxu0 %v196
    %v356 = vpop.f32.mrf.mxu0
    %v357 = vadd.f32 0.0, %v356
    %v358 = vpop.f32.mrf.mxu0
    %359 = vmatprep.mubr.f32.mxu0 0.0
    %360 = vmatmul.mubr.f32.gmra.mxu0 %v201
    %v361 = vpop.f32.mrf.mxu0
    %v362 = vadd.f32 0.0, %v361
    %v363 = vpop.f32.mrf.mxu0
    %364 = vmatprep.mubr.f32.mxu0 0.0
    %365 = vmatmul.mubr.f32.gmra.mxu0 %v206
    %v366 = vpop.f32.mrf.mxu0
    %v367 = vadd.f32 0.0, %v366
    %v368 = vpop.f32.mrf.mxu0
    %369 = vmatprep.mubr.f32.mxu0 0.0
    %370 = vmatmul.mubr.f32.gmra.mxu0 %v211
    %v371 = vpop.f32.mrf.mxu0
    %v372 = vadd.f32 0.0, %v371
    %v373 = vpop.f32.mrf.mxu0
    %374 = vmatprep.mubr.f32.mxu0 0.0
    %375 = vmatmul.mubr.f32.gmra.mxu0 %v216
    %v376 = vpop.f32.mrf.mxu0
    %v377 = vadd.f32 0.0, %v376
    %v378 = vpop.f32.mrf.mxu0
    %379 = vmatprep.mubr.f32.mxu0 0.0
    %380 = vmatmul.mubr.f32.gmra.mxu0 %v221
    %v381 = vpop.f32.mrf.mxu0
    %v382 = vadd.f32 0.0, %v381
    %v383 = vpop.f32.mrf.mxu0
    %384 = vmatprep.mubr.f32.mxu0 0.0
    %385 = vmatmul.mubr.f32.gmra.mxu0 %v226
    %v386 = vpop.f32.mrf.mxu0
    %v387 = vadd.f32 0.0, %v386
    %v388 = vpop.f32.mrf.mxu0
    %389 = vmatprep.mubr.f32.mxu0 0.0
    %390 = vmatmul.mubr.f32.gmra.mxu0 %v231
    %v391 = vpop.f32.mrf.mxu0
    %v392 = vadd.f32 0.0, %v391
    %v393 = vpop.f32.mrf.mxu0
    %394 = vmatprep.mubr.f32.mxu0 0.0
    %395 = vmatmul.mubr.f32.gmra.mxu0 %v236
    %v396 = vpop.f32.mrf.mxu0
    %v397 = vadd.f32 0.0, %v396
    %v398 = vpop.f32.mrf.mxu0
    %399 = vmatprep.mubr.f32.mxu0 0.0
    %400 = vmatmul.mubr.f32.gmra.mxu0 %v241
    %v401 = vpop.f32.mrf.mxu0
    %v402 = vadd.f32 0.0, %v401
    %v403 = vpop.f32.mrf.mxu0
    %404 = vmatprep.mubr.f32.mxu0 0.0
    %405 = vmatmul.mubr.f32.gmra.mxu0 %v246
    %v406 = vpop.f32.mrf.mxu0
    %v407 = vadd.f32 0.0, %v406
    %v408 = vpop.f32.mrf.mxu0
    %409 = vmatprep.mubr.f32.mxu0 0.0
    %410 = vmatmul.mubr.f32.gmra.mxu0 %v251
    %v411 = vpop.f32.mrf.mxu0
    %v412 = vadd.f32 0.0, %v411
    %v413 = vpop.f32.mrf.mxu0
    %414 = vmatprep.mubr.f32.mxu0 0.0
    %415 = vmatmul.mubr.f32.gmra.mxu0 %v256
    %v416 = vpop.f32.mrf.mxu0
    %v417 = vadd.f32 0.0, %v416
    %v418 = vpop.f32.mrf.mxu0
    %419 = vmatprep.mubr.f32.mxu0 0.0
    %420 = vmatmul.mubr.f32.gmra.mxu0 %v261
    %v421 = vpop.f32.mrf.mxu0
    %v422 = vadd.f32 0.0, %v421
    %v423 = vpop.f32.mrf.mxu0
    %424 = vmatprep.mubr.f32.mxu0 0.0
    %425 = vmatmul.mubr.f32.gmra.mxu0 %v266
    %v426 = vpop.f32.mrf.mxu0
    %v427 = vadd.f32 0.0, %v426
    %v428 = vpop.f32.mrf.mxu0
    %429 = vdwg.mxu0
    %v430 = vmul.f32 %v352, 2.0
    %v431 = vmul.f32 %v357, 2.0
    %v432 = vmul.f32 %v362, 2.0
    %v433 = vmul.f32 %v367, 2.0
    %v434 = vmul.f32 %v372, 2.0
    %v435 = vmul.f32 %v377, 2.0
    %v436 = vmul.f32 %v382, 2.0
    %v437 = vmul.f32 %v387, 2.0
    %v438 = vmul.f32 %v392, 2.0
    %v439 = vmul.f32 %v397, 2.0
    %v440 = vmul.f32 %v402, 2.0
    %v441 = vmul.f32 %v407, 2.0
    %v442 = vmul.f32 %v412, 2.0
    %v443 = vmul.f32 %v417, 2.0
    %v444 = vmul.f32 %v422, 2.0
    %v445 = vmul.f32 %v427, 2.0
    %446 = vmatprep.subr.mxu0 0.0
    %447 = vmatpush1.msra.mxu0 %v107
    %448 = vmatprep.subr.mxu0 0.0
    %449 = vmatpush1.msra.mxu0 %v106
    %450 = vmatprep.subr.mxu0 0.0
    %451 = vmatpush1.msra.mxu0 %v105
    %452 = vmatprep.subr.mxu0 0.0
    %453 = vmatpush1.msra.mxu0 %v104
    %454 = vmatprep.subr.mxu0 0.0
    %455 = vmatpush1.msra.mxu0 %v103
    %456 = vmatprep.subr.mxu0 0.0
    %457 = vmatpush1.msra.mxu0 %v102
    %458 = vmatprep.subr.mxu0 0.0
    %459 = vmatpush1.msra.mxu0 %v101
    %460 = vmatprep.subr.mxu0 0.0
    %461 = vmatpush1.msra.mxu0 %v100
    %462 = vmatprep.subr.mxu0 0.0
    %463 = vmatpush1.msra.mxu0 %v99
    %464 = vmatprep.subr.mxu0 0.0
    %465 = vmatpush1.msra.mxu0 %v98
    %466 = vmatprep.subr.mxu0 0.0
    %467 = vmatpush1.msra.mxu0 %v97
    %468 = vmatprep.subr.mxu0 0.0
    %469 = vmatpush1.msra.mxu0 %v96
    %470 = vmatprep.subr.mxu0 0.0
    %471 = vmatpush1.msra.mxu0 %v95
    %472 = vmatprep.subr.mxu0 0.0
    %473 = vmatpush1.msra.mxu0 %v94
    %474 = vmatprep.subr.mxu0 0.0
    %475 = vmatpush1.msra.mxu0 %v93
    %476 = vmatprep.subr.mxu0 0.0
    %477 = vmatpush1.msra.mxu0 %v92
    %478 = vmatprep.subr.mxu0 0.0
    %479 = vmatpush2.msra.mxu0 0.0
    %480 = vmatprep.subr.mxu0 0.0
    %481 = vmatpush2.msra.mxu0 0.0
    %482 = vmatprep.subr.mxu0 0.0
    %483 = vmatpush2.msra.mxu0 0.0
    %484 = vmatprep.subr.mxu0 0.0
    %485 = vmatpush2.msra.mxu0 0.0
    %486 = vmatprep.subr.mxu0 0.0
    %487 = vmatpush2.msra.mxu0 0.0
    %488 = vmatprep.subr.mxu0 0.0
    %489 = vmatpush2.msra.mxu0 0.0
    %490 = vmatprep.subr.mxu0 0.0
    %491 = vmatpush2.msra.mxu0 0.0
    %492 = vmatprep.subr.mxu0 0.0
    %493 = vmatpush2.msra.mxu0 0.0
    %494 = vmatprep.subr.mxu0 0.0
    %495 = vmatpush2.msra.mxu0 0.0
    %496 = vmatprep.subr.mxu0 0.0
    %497 = vmatpush2.msra.mxu0 0.0
    %498 = vmatprep.subr.mxu0 0.0
    %499 = vmatpush2.msra.mxu0 0.0
    %500 = vmatprep.subr.mxu0 0.0
    %501 = vmatpush2.msra.mxu0 0.0
    %502 = vmatprep.subr.mxu0 0.0
    %503 = vmatpush2.msra.mxu0 0.0
    %504 = vmatprep.subr.mxu0 0.0
    %505 = vmatpush2.msra.mxu0 0.0
    %506 = vmatprep.subr.mxu0 0.0
    %507 = vmatpush2.msra.mxu0 0.0
    %508 = vmatprep.subr.mxu0 0.0
    %509 = vmatpush2.msra.mxu0 0.0
    %510 = vmatprep.mubr.f32.mxu0 0.0
    %511 = vmatmul.mubr.f32.gmra.mxu0 %v76
    %v512 = vpop.f32.mrf.mxu0
    %v513 = vadd.f32 %v430, %v512
    %v514 = vpop.f32.mrf.mxu0
    %515 = vmatprep.mubr.f32.mxu0 0.0
    %516 = vmatmul.mubr.f32.gmra.mxu0 %v77
    %v517 = vpop.f32.mrf.mxu0
    %v518 = vadd.f32 %v431, %v517
    %v519 = vpop.f32.mrf.mxu0
    %520 = vmatprep.mubr.f32.mxu0 0.0
    %521 = vmatmul.mubr.f32.gmra.mxu0 %v78
    %v522 = vpop.f32.mrf.mxu0
    %v523 = vadd.f32 %v432, %v522
    %v524 = vpop.f32.mrf.mxu0
    %525 = vmatprep.mubr.f32.mxu0 0.0
    %526 = vmatmul.mubr.f32.gmra.mxu0 %v79
    %v527 = vpop.f32.mrf.mxu0
    %v528 = vadd.f32 %v433, %v527
    %v529 = vpop.f32.mrf.mxu0
    %530 = vmatprep.mubr.f32.mxu0 0.0
    %531 = vmatmul.mubr.f32.gmra.mxu0 %v80
    %v532 = vpop.f32.mrf.mxu0
    %v533 = vadd.f32 %v434, %v532
    %v534 = vpop.f32.mrf.mxu0
    %535 = vmatprep.mubr.f32.mxu0 0.0
    %536 = vmatmul.mubr.f32.gmra.mxu0 %v81
    %v537 = vpop.f32.mrf.mxu0
    %v538 = vadd.f32 %v435, %v537
    %v539 = vpop.f32.mrf.mxu0
    %540 = vmatprep.mubr.f32.mxu0 0.0
    %541 = vmatmul.mubr.f32.gmra.mxu0 %v82
    %v542 = vpop.f32.mrf.mxu0
    %v543 = vadd.f32 %v436, %v542
    %v544 = vpop.f32.mrf.mxu0
    %545 = vmatprep.mubr.f32.mxu0 0.0
    %546 = vmatmul.mubr.f32.gmra.mxu0 %v83
    %v547 = vpop.f32.mrf.mxu0
    %v548 = vadd.f32 %v437, %v547
    %v549 = vpop.f32.mrf.mxu0
    %550 = vmatprep.mubr.f32.mxu0 0.0
    %551 = vmatmul.mubr.f32.gmra.mxu0 %v84
    %v552 = vpop.f32.mrf.mxu0
    %v553 = vadd.f32 %v438, %v552
    %v554 = vpop.f32.mrf.mxu0
    %555 = vmatprep.mubr.f32.mxu0 0.0
    %556 = vmatmul.mubr.f32.gmra.mxu0 %v85
    %v557 = vpop.f32.mrf.mxu0
    %v558 = vadd.f32 %v439, %v557
    %v559 = vpop.f32.mrf.mxu0
    %560 = vmatprep.mubr.f32.mxu0 0.0
    %561 = vmatmul.mubr.f32.gmra.mxu0 %v86
    %v562 = vpop.f32.mrf.mxu0
    %v563 = vadd.f32 %v440, %v562
    %v564 = vpop.f32.mrf.mxu0
    %565 = vmatprep.mubr.f32.mxu0 0.0
    %566 = vmatmul.mubr.f32.gmra.mxu0 %v87
    %v567 = vpop.f32.mrf.mxu0
    %v568 = vadd.f32 %v441, %v567
    %v569 = vpop.f32.mrf.mxu0
    %570 = vmatprep.mubr.f32.mxu0 0.0
    %571 = vmatmul.mubr.f32.gmra.mxu0 %v88
    %v572 = vpop.f32.mrf.mxu0
    %v573 = vadd.f32 %v442, %v572
    %v574 = vpop.f32.mrf.mxu0
    %575 = vmatprep.mubr.f32.mxu0 0.0
    %576 = vmatmul.mubr.f32.gmra.mxu0 %v89
    %v577 = vpop.f32.mrf.mxu0
    %v578 = vadd.f32 %v443, %v577
    %v579 = vpop.f32.mrf.mxu0
    %580 = vmatprep.mubr.f32.mxu0 0.0
    %581 = vmatmul.mubr.f32.gmra.mxu0 %v90
    %v582 = vpop.f32.mrf.mxu0
    %v583 = vadd.f32 %v444, %v582
    %v584 = vpop.f32.mrf.mxu0
    %585 = vmatprep.mubr.f32.mxu0 0.0
    %586 = vmatmul.mubr.f32.gmra.mxu0 %v91
    %v587 = vpop.f32.mrf.mxu0
    %v588 = vadd.f32 %v445, %v587
    %v589 = vpop.f32.mrf.mxu0
    %590 = vdwg.mxu0
    %v591 = vld [vmem:[%s2] sm:$0x1]
    %v593 = vlaneseq
    %v594 = vshrl.u32 %v593, 7
    %v595 = vsub.s32 0, %v594
    %v596 = vrot.slane %v591, %v595
    %v598 = vadd.f32 %v513, %v596
    %v599 = vadd.f32 %v518, %v596
    %v600 = vadd.f32 %v523, %v596
    %v601 = vadd.f32 %v528, %v596
    %v602 = vadd.f32 %v533, %v596
    %v603 = vadd.f32 %v538, %v596
    %v604 = vadd.f32 %v543, %v596
    %v605 = vadd.f32 %v548, %v596
    %v606 = vadd.f32 %v553, %v596
    %v607 = vadd.f32 %v558, %v596
    %v608 = vadd.f32 %v563, %v596
    %v609 = vadd.f32 %v568, %v596
    %v610 = vadd.f32 %v573, %v596
    %v611 = vadd.f32 %v578, %v596
    %v612 = vadd.f32 %v583, %v596
    %v613 = vadd.f32 %v588, %v596
    %614 = vst [vmem:[#allocation10] sm:$0xff] %v598
    %615 = vst [vmem:[#allocation10 + $0x8] sm:$0xff] %v599
    %616 = vst [vmem:[#allocation10 + $0x10] sm:$0xff] %v600
    %617 = vst [vmem:[#allocation10 + $0x18] sm:$0xff] %v601
    %618 = vst [vmem:[#allocation10 + $0x20] sm:$0xff] %v602
    %619 = vst [vmem:[#allocation10 + $0x28] sm:$0xff] %v603
    %620 = vst [vmem:[#allocation10 + $0x30] sm:$0xff] %v604
    %621 = vst [vmem:[#allocation10 + $0x38] sm:$0xff] %v605
    %622 = vst [vmem:[#allocation10 + $0x40] sm:$0xff] %v606
    %623 = vst [vmem:[#allocation10 + $0x48] sm:$0xff] %v607
    %624 = vst [vmem:[#allocation10 + $0x50] sm:$0xff] %v608
    %625 = vst [vmem:[#allocation10 + $0x58] sm:$0xff] %v609
    %626 = vst [vmem:[#allocation10 + $0x60] sm:$0xff] %v610
    %627 = vst [vmem:[#allocation10 + $0x68] sm:$0xff] %v611
    %628 = vst [vmem:[#allocation10 + $0x70] sm:$0xff] %v612
    %629 = vst [vmem:[#allocation10 + $0x78] sm:$0xff] %v613
    // Predicated region
    $region38: #{tpu_custom_call.1} parent=1 // pred_check
      _
    $region39: #{tpu_custom_call.1} parent=1 // pred_check_branch
      %631 = sbr.rel (0) target = $region41
    $region40: #{tpu_custom_call.1} parent=1 // pred_region
      %s633 = ssub.s32 2048, 2048
      %634 = vsyncadd [#allocation4], %s633
      %s635 = sshll.u32 [#allocation10], 4
      %s636 = int_to_ptr.vmem [resolvable:$true] %s635
      %641 = dma.vmem_to_hbm [thread:$0]  %s636, 2048, %s5, [#allocation4], 128, 128, 8
    $region41: #{tpu_custom_call.1} parent=1 // pred_fallthru
      _
    // Predicated region
    $region42: #{tpu_custom_call.1} parent=1 // pred_check
      _
    $region43: #{tpu_custom_call.1} parent=1 // pred_check_branch
      %643 = sbr.rel (0) target = $region45
    $region44: #{tpu_custom_call.1} parent=1 // pred_region
      %644 = dma.done [#allocation4], 2048
    $region45: #{tpu_custom_call.1} parent=1 // pred_fallthru
      _
    %645 = vsyncpa [#allocation3], 1
    %646 = vsyncpa [#allocation6], 1
    %647 = vsyncpa [#allocation9], 1
    %648 = vsyncpa [#allocation4], 1

</llo_original>
